<compile_context>
chip_gen: v6e
topology: v6e:2x2x1
jax: 0.10.0
libtpu: 0.0.40
codegen_flags: <defaults>
</compile_context>

<pallas_src>
import functools

import jax
import jax.numpy as jnp
from jax.experimental import pallas as pl
from jax.experimental.pallas import tpu as pltpu

_NEG_BIG = -1e30  # bias for padded vocab columns (finite, avoids inf-inf NaNs)


def _round_up(x, m):
    return (x + m - 1) // m * m


# --------------------------------------------------------------------------
# Kernels
# --------------------------------------------------------------------------
def _accumulate_stats(scores, m_sc, l_sc):
    """Online (flash-style) running max / running sum-exp update."""
    m_prev = m_sc[...]
    m_new = jnp.maximum(m_prev, jnp.max(scores, axis=-1, keepdims=True))
    l_sc[...] = (l_sc[...] * jnp.exp(m_prev - m_new)
                 + jnp.sum(jnp.exp(scores - m_new), axis=-1, keepdims=True))
    m_sc[...] = m_new


def _skipgram_kernel_slab(emb_ref, wt_ref, b_ref, out_ref, m_sc, l_sc, slab_ref):
    # emb_ref: (TB, E) bf16   wt_ref: (E, TV) bf16   b_ref: (1, TV) f32
    # out_ref: (TB, TV) f32
    # m_sc, l_sc: (TB, 1) f32 scratch; slab_ref: (TB, V_pad) f32 score cache.
    p = pl.program_id(1)   # 0: compute scores + LSE stats, 1: write output
    vi = pl.program_id(2)  # vocab tile index
    tv = out_ref.shape[1]

    @pl.when((p == 0) & (vi == 0))
    def _init():
        m_sc[...] = jnp.full_like(m_sc, -jnp.inf)
        l_sc[...] = jnp.zeros_like(l_sc)

    @pl.when(p == 0)
    def _pass0():
        # bf16 x bf16 matmul with f32 accumulation on the MXU.
        scores = jnp.dot(emb_ref[...], wt_ref[...],
                         preferred_element_type=jnp.float32) + b_ref[...]
        off = pl.multiple_of(vi * tv, tv)
        slab_ref[:, pl.ds(off, tv)] = scores          # cache raw scores
        _accumulate_stats(scores, m_sc, l_sc)

    @pl.when(p == 1)
    def _pass1():
        # No matmul, no weight DMA (weight spec pinned) -- just slab - lse.
        lse = m_sc[...] + jnp.log(l_sc[...])
        off = pl.multiple_of(vi * tv, tv)
        out_ref[...] = (slab_ref[:, pl.ds(off, tv)] - lse).astype(out_ref.dtype)


def _skipgram_kernel_recompute(emb_ref, wt_ref, b_ref, out_ref, m_sc, l_sc):
    # Fallback for vocabularies whose score slab does not fit in VMEM:
    # stream the weight twice and recompute the scores in pass 1.
    p = pl.program_id(1)
    vi = pl.program_id(2)

    @pl.when((p == 0) & (vi == 0))
    def _init():
        m_sc[...] = jnp.full_like(m_sc, -jnp.inf)
        l_sc[...] = jnp.zeros_like(l_sc)

    scores = jnp.dot(emb_ref[...], wt_ref[...],
                     preferred_element_type=jnp.float32) + b_ref[...]

    @pl.when(p == 0)
    def _acc():
        _accumulate_stats(scores, m_sc, l_sc)

    @pl.when(p == 1)
    def _fin():
        lse = m_sc[...] + jnp.log(l_sc[...])
        out_ref[...] = (scores - lse).astype(out_ref.dtype)


# --------------------------------------------------------------------------
# VMEM budgeting / tile selection (host side, outside the jitted hot path)
# --------------------------------------------------------------------------
def _vmem_budget_bytes():
    cap = None
    try:
        info = pltpu.get_tpu_info()
        cap = int(getattr(info, "vmem_capacity_bytes", 0)) or None
    except Exception:
        cap = None
    if cap is None:
        kind = ""
        try:
            kind = jax.devices()[0].device_kind.lower()
        except Exception:
            pass
        cap = (64 << 20) if "v7" in kind else (128 << 20)
    return int(cap * 0.85)          # headroom for Mosaic internal scratch


def _num_tensorcores():
    try:
        kind = jax.devices()[0].device_kind.lower()
        if "v7" in kind:
            return 2
    except Exception:
        pass
    return 1


def _vmem_estimate(tb, tv, e, v_pad, use_slab):
    bf16, f32 = 2, 4
    need = (2 * tb * e * bf16        # embedded activations tile (double-buffered)
            + 2 * e * tv * bf16      # weight tile (double-buffered)
            + 2 * 8 * tv * f32       # bias tile (sublane-padded, double-buffered)
            + 2 * tb * tv * f32      # output tile (double-buffered)
            + tb * tv * f32          # live `scores` temporary in the kernel
            + 2 * tb * 128 * f32)    # m / l scratch (lane-padded)
    if use_slab:
        need += tb * v_pad * f32     # score slab
    return need


def _choose_config(B, E, v_pad, tv, batch_tile, force_recompute):
    budget = _vmem_budget_bytes()
    cores = _num_tensorcores()

    tb = min(_round_up(batch_tile, 8), _round_up(B, 8))
    if cores > 1 and B > 8:
        # Keep >= `cores` batch tiles so the "parallel" batch axis shards
        # across TensorCores (v7x megacore); no-op on single-TC v5e/v6e.
        tb = min(tb, max(8, _round_up(-(-B // cores), 8)))

    use_slab = False
    if not force_recompute:
        tb_slab = tb
        while tb_slab > 64 and _vmem_estimate(tb_slab, tv, E, v_pad, True) > budget:
            tb_slab //= 2
        if _vmem_estimate(tb_slab, tv, E, v_pad, True) <= budget:
            use_slab, tb = True, tb_slab

    need = _vmem_estimate(tb, tv, E, v_pad, use_slab)
    vmem_limit = int(min(budget, max(2 * need + (2 << 20), 32 << 20)))
    return tb, use_slab, vmem_limit


# --------------------------------------------------------------------------
# Parameter prep + forward
# --------------------------------------------------------------------------
def prepare_params(embed_table, lin_weight, lin_bias, *, vocab_tile=4096):
    """One-time parameter prep, outside the per-step hot path:
    bf16 cast, pre-transpose the linear weight to (E, V), pad the vocab axis."""
    V, E = embed_table.shape
    assert lin_weight.shape == (V, E) and lin_bias.shape == (V,)
    tv = min(_round_up(vocab_tile, 128), _round_up(V, 128))
    v_pad = _round_up(V, tv)

    wt = jnp.transpose(lin_weight).astype(jnp.bfloat16)            # (E, V)
    wt = jnp.pad(wt, ((0, 0), (0, v_pad - V)))                     # (E, V_pad)
    bias = jnp.pad(lin_bias.astype(jnp.float32), (0, v_pad - V),
                   constant_values=_NEG_BIG).reshape(1, v_pad)     # (1, V_pad)
    embed_bf16 = embed_table.astype(jnp.bfloat16)                  # (V, E)
    return embed_bf16, wt, bias, V, tv


@functools.partial(jax.jit, static_argnames=(
    "n_vocab", "tv", "tb", "use_slab", "vmem_limit", "trim"))
def _forward(x_ids, embed_bf16, wt, bias, *, n_vocab, tv, tb, use_slab,
             vmem_limit, trim):
    B = x_ids.shape[0]
    E = embed_bf16.shape[1]
    v_pad = wt.shape[1]
    b_pad = _round_up(B, tb)
    nb, nv = b_pad // tb, v_pad // tv
    last_v = nv - 1

    # Embedding gather kept as XLA glue feeding the kernel (tiny traffic).
    # TODO(synk): could be fused in-kernel via scalar-prefetched ids + per-row
    # DMA from an ANY-space embedding table; not worth it per profiling.
    ids = jnp.pad(x_ids, (0, b_pad - B)) if b_pad != B else x_ids
    emb = jnp.take(embed_bf16, ids, axis=0)            # (b_pad, E) bf16

    grid = (nb, 2, nv)

    emb_spec = pl.BlockSpec((tb, E), lambda bi, p, vi: (bi, 0))
    # Output pinned to (bi, 0) during pass 0 so each tile is written back to
    # HBM exactly once, with pass-1 data.  Requires p/vi to be "arbitrary".
    out_spec = pl.BlockSpec((tb, tv), lambda bi, p, vi: (bi, p * vi))

    if use_slab:
        kernel = _skipgram_kernel_slab
        # Pin weight/bias to the last pass-0 block during pass 1: zero extra DMA.
        wt_spec = pl.BlockSpec(
            (E, tv), lambda bi, p, vi: (0, vi * (1 - p) + last_v * p))
        b_spec = pl.BlockSpec(
            (1, tv), lambda bi, p, vi: (0, vi * (1 - p) + last_v * p))
        scratch = [pltpu.VMEM((tb, 1), jnp.float32),       # running max
                   pltpu.VMEM((tb, 1), jnp.float32),       # running sum-exp
                   pltpu.VMEM((tb, v_pad), jnp.float32)]   # score slab
    else:
        kernel = _skipgram_kernel_recompute
        wt_spec = pl.BlockSpec((E, tv), lambda bi, p, vi: (0, vi))
        b_spec = pl.BlockSpec((1, tv), lambda bi, p, vi: (0, vi))
        scratch = [pltpu.VMEM((tb, 1), jnp.float32),
                   pltpu.VMEM((tb, 1), jnp.float32)]

    out = pl.pallas_call(
        kernel,
        out_shape=jax.ShapeDtypeStruct((b_pad, v_pad), jnp.float32),
        grid_spec=pltpu.PrefetchScalarGridSpec(
            num_scalar_prefetch=0,
            grid=grid,
            in_specs=[emb_spec, wt_spec, b_spec],
            out_specs=out_spec,
            scratch_shapes=scratch),
        compiler_params=pltpu.CompilerParams(
            dimension_semantics=("parallel", "arbitrary", "arbitrary"),
            vmem_limit_bytes=vmem_limit),
    )(emb, wt, bias)

    if trim and (b_pad != B or v_pad != n_vocab):
        out = out[:B, :n_vocab]
    return out


def skipgram_forward(x_ids, params, *, batch_tile=256, trim_output=True,
                     force_recompute=False):
    """params = prepare_params(embed_table, lin_weight, lin_bias).

    trim_output=False returns the (B_pad, V_pad) buffer and skips the final
    slice copy (an extra full read+write of the largest HBM stream)."""
    embed_bf16, wt, bias, n_vocab, tv = params
    B = int(x_ids.shape[0])
    E = int(embed_bf16.shape[1])
    v_pad = int(wt.shape[1])
    tb, use_slab, vmem_limit = _choose_config(B, E, v_pad, tv, batch_tile,
                                              force_recompute)
    return _forward(x_ids, embed_bf16, wt, bias,
                    n_vocab=n_vocab, tv=tv, tb=tb, use_slab=use_slab,
                    vmem_limit=vmem_limit, trim=trim_output)


if __name__ == "__main__":
    # Small deterministic setup (non-multiples of the tiles to exercise padding).
    n_vocab, n_embed, batch = 500, 64, 30

    key = jax.random.PRNGKey(0)
    k_emb, k_w, k_b, k_x = jax.random.split(key, 4)

    embed_table = jax.random.normal(k_emb, (n_vocab, n_embed), dtype=jnp.float32)
    bound = 1.0 / (n_embed ** 0.5)
    lin_weight = jax.random.uniform(k_w, (n_vocab, n_embed),
                                    minval=-bound, maxval=bound, dtype=jnp.float32)
    lin_bias = jax.random.uniform(k_b, (n_vocab,),
                                  minval=-bound, maxval=bound, dtype=jnp.float32)
    x_ids = jax.random.randint(k_x, (batch,), 0, n_vocab, dtype=jnp.int32)

    # References.
    ref_scores_f32 = (jnp.dot(jnp.take(embed_table, x_ids, axis=0),
                              lin_weight.T, precision=jax.lax.Precision.HIGHEST)
                      + lin_bias)
    ref_f32 = jax.nn.log_softmax(ref_scores_f32, axis=1)
    # Matched-precision reference (bf16 operands, f32 accumulation, f32 softmax).
    emb_bf = jnp.take(embed_table.astype(jnp.bfloat16), x_ids, axis=0).astype(jnp.float32)
    w_bf = lin_weight.astype(jnp.bfloat16).astype(jnp.float32)
    ref_bf = jax.nn.log_softmax(emb_bf @ w_bf.T + lin_bias, axis=1)

    # Run 1: production-style defaults (slab path, tiles clamped to demo shapes).
    params = prepare_params(embed_table, lin_weight, lin_bias)
    out1 = jax.block_until_ready(skipgram_forward(x_ids, params))

    # Run 2: small tiles -> several batch & vocab tiles; exercises the slab
    # dynamic slicing, weight pinning in pass 1, batch & vocab padding.
    params_small = prepare_params(embed_table, lin_weight, lin_bias, vocab_tile=128)
    out2 = jax.block_until_ready(skipgram_forward(x_ids, params_small, batch_tile=16))

    # Run 3: streaming-recompute fallback (used when the score slab would not
    # fit in the per-generation VMEM budget).
    out3 = jax.block_until_ready(
        skipgram_forward(x_ids, params_small, batch_tile=16, force_recompute=True))

    for out in (out1, out2, out3):
        assert out.shape == (batch, n_vocab)
        assert bool(jnp.allclose(out, ref_bf, atol=1e-4, rtol=1e-4)), \
            "mismatch vs matched-precision reference"
        assert bool(jnp.allclose(out, ref_f32, atol=3e-2, rtol=3e-2)), \
            "mismatch vs f32 reference"

    print("KERNEL_OK")
</pallas_src>

<mosaic_0001>
module attributes {stable_mosaic.version = 11 : i64} {
  func.func @_skipgram_kernel_slab(%arg0: i32, %arg1: i32, %arg2: i32, %arg3: memref<32x64xbf16, #tpu.memory_space<vmem>>, %arg4: memref<64x512xbf16, #tpu.memory_space<vmem>>, %arg5: memref<1x512xf32, #tpu.memory_space<vmem>>, %arg6: memref<32x512xf32, #tpu.memory_space<vmem>>, %arg7: memref<32x1xf32, #tpu.memory_space<vmem>>, %arg8: memref<32x1xf32, #tpu.memory_space<vmem>>, %arg9: memref<32x512xf32, #tpu.memory_space<vmem>>) attributes {dimension_semantics = [#tpu.dimension_semantics<parallel>, #tpu.dimension_semantics<arbitrary>, #tpu.dimension_semantics<arbitrary>], iteration_bounds = array<i64: 1, 2, 1>, scalar_prefetch = 0 : i64, scratch_operands = 3 : i64, tpu.core_type = #tpu.core_type<tc>, window_params = [{transform_indices = @transform_0, window_bounds = array<i64: 32, 64>}, {transform_indices = @transform_1, window_bounds = array<i64: 64, 512>}, {transform_indices = @transform_2, window_bounds = array<i64: 1, 512>}, {transform_indices = @transform_3, window_bounds = array<i64: 32, 512>}]} {
    %c0_i32 = arith.constant 0 : i32
    %0 = arith.cmpi eq, %arg1, %c0_i32 : i32
    %c0_i32_0 = arith.constant 0 : i32
    %1 = arith.cmpi eq, %arg2, %c0_i32_0 : i32
    %2 = arith.andi %0, %1 : i1
    %3 = arith.extui %2 : i1 to i32
    %c0_i32_1 = arith.constant 0 : i32
    %4 = arith.cmpi ne, %3, %c0_i32_1 : i32
    scf.if %4 {
      %cst = arith.constant 0xFF800000 : f32
      %11 = vector.broadcast %cst : f32 to vector<32x1xf32>
      %c0 = arith.constant 0 : index
      %c0_5 = arith.constant 0 : index
      %12 = vector.load %arg7[%c0, %c0_5] : memref<32x1xf32, #tpu.memory_space<vmem>>, vector<32x1xf32>
      tpu.vector_store %arg7[%c0, %c0_5], %11 {strides = array<i32>} : memref<32x1xf32, #tpu.memory_space<vmem>>, vector<32x1xf32>,
      %cst_6 = arith.constant 0.000000e+00 : f32
      %13 = vector.broadcast %cst_6 : f32 to vector<32x1xf32>
      %c0_7 = arith.constant 0 : index
      %c0_8 = arith.constant 0 : index
      %14 = vector.load %arg8[%c0_7, %c0_8] : memref<32x1xf32, #tpu.memory_space<vmem>>, vector<32x1xf32>
      tpu.vector_store %arg8[%c0_7, %c0_8], %13 {strides = array<i32>} : memref<32x1xf32, #tpu.memory_space<vmem>>, vector<32x1xf32>,
    } else {
    }
    %c0_i32_2 = arith.constant 0 : i32
    %5 = arith.cmpi eq, %arg1, %c0_i32_2 : i32
    %6 = arith.extui %5 : i1 to i32
    %c0_i32_3 = arith.constant 0 : i32
    %7 = arith.cmpi ne, %6, %c0_i32_3 : i32
    scf.if %7 {
      %c0 = arith.constant 0 : index
      %c0_5 = arith.constant 0 : index
      %11 = vector.load %arg3[%c0, %c0_5] : memref<32x64xbf16, #tpu.memory_space<vmem>>, vector<32x64xbf16>
      %c0_6 = arith.constant 0 : index
      %c0_7 = arith.constant 0 : index
      %12 = vector.load %arg4[%c0_6, %c0_7] : memref<64x512xbf16, #tpu.memory_space<vmem>>, vector<64x512xbf16>
      %cst = arith.constant dense<0.000000e+00> : vector<32x512xf32>
      %13 = tpu.matmul %11, %12, %cst {dimension_numbers = #tpu.dot_dimension_numbers<[1], [0], [0], [1], [0, 0, 1, 1], [], []>} : vector<32x64xbf16>, vector<64x512xbf16>, vector<32x512xf32> -> vector<32x512xf32>
      %c0_8 = arith.constant 0 : index
      %c0_9 = arith.constant 0 : index
      %14 = vector.load %arg5[%c0_8, %c0_9] : memref<1x512xf32, #tpu.memory_space<vmem>>, vector<1x512xf32>
      %15 = vector.broadcast %14 : vector<1x512xf32> to vector<32x512xf32>
      %16 = arith.addf %13, %15 : vector<32x512xf32>
      %c512_i32 = arith.constant 512 : i32
      %17 = arith.muli %arg2, %c512_i32 : i32
      %18 = tpu.assume_multiple %17, 512 : i32
      %c0_10 = arith.constant 0 : index
      %19 = arith.index_cast %18 : i32 to index
      %20 = vector.load %arg9[%c0_10, %19] : memref<32x512xf32, #tpu.memory_space<vmem>>, vector<32x512xf32>
      tpu.vector_store %arg9[%c0_10, %19], %16 {strides = array<i32>} : memref<32x512xf32, #tpu.memory_space<vmem>>, vector<32x512xf32>,
      %c0_11 = arith.constant 0 : index
      %c0_12 = arith.constant 0 : index
      %21 = vector.load %arg7[%c0_11, %c0_12] : memref<32x1xf32, #tpu.memory_space<vmem>>, vector<32x1xf32>
      %cst_13 = arith.constant dense<0xFF800000> : vector<32xf32>
      %22 = vector.multi_reduction <maximumf>, %16, %cst_13 [1] : vector<32x512xf32> to vector<32xf32>
      %23 = vector.shape_cast %22 : vector<32xf32> to vector<32x1xf32>
      %24 = arith.maximumf %21, %23 : vector<32x1xf32>
      %c0_14 = arith.constant 0 : index
      %c0_15 = arith.constant 0 : index
      %25 = vector.load %arg8[%c0_14, %c0_15] : memref<32x1xf32, #tpu.memory_space<vmem>>, vector<32x1xf32>
      %26 = arith.subf %21, %24 : vector<32x1xf32>
      %27 = math.exp %26 : vector<32x1xf32>
      %28 = arith.mulf %25, %27 : vector<32x1xf32>
      %29 = vector.broadcast %24 : vector<32x1xf32> to vector<32x512xf32>
      %30 = arith.subf %16, %29 : vector<32x512xf32>
      %31 = math.exp %30 : vector<32x512xf32>
      %cst_16 = arith.constant dense<0.000000e+00> : vector<32xf32>
      %32 = vector.multi_reduction <add>, %31, %cst_16 [1] : vector<32x512xf32> to vector<32xf32>
      %33 = vector.shape_cast %32 : vector<32xf32> to vector<32x1xf32>
      %34 = arith.addf %28, %33 : vector<32x1xf32>
      %c0_17 = arith.constant 0 : index
      %c0_18 = arith.constant 0 : index
      %35 = vector.load %arg8[%c0_17, %c0_18] : memref<32x1xf32, #tpu.memory_space<vmem>>, vector<32x1xf32>
      tpu.vector_store %arg8[%c0_17, %c0_18], %34 {strides = array<i32>} : memref<32x1xf32, #tpu.memory_space<vmem>>, vector<32x1xf32>,
      %c0_19 = arith.constant 0 : index
      %c0_20 = arith.constant 0 : index
      %36 = vector.load %arg7[%c0_19, %c0_20] : memref<32x1xf32, #tpu.memory_space<vmem>>, vector<32x1xf32>
      tpu.vector_store %arg7[%c0_19, %c0_20], %24 {strides = array<i32>} : memref<32x1xf32, #tpu.memory_space<vmem>>, vector<32x1xf32>,
    } else {
    }
    %c1_i32 = arith.constant 1 : i32
    %8 = arith.cmpi eq, %arg1, %c1_i32 : i32
    %9 = arith.extui %8 : i1 to i32
    %c0_i32_4 = arith.constant 0 : i32
    %10 = arith.cmpi ne, %9, %c0_i32_4 : i32
    scf.if %10 {
      %c0 = arith.constant 0 : index
      %c0_5 = arith.constant 0 : index
      %11 = vector.load %arg7[%c0, %c0_5] : memref<32x1xf32, #tpu.memory_space<vmem>>, vector<32x1xf32>
      %c0_6 = arith.constant 0 : index
      %c0_7 = arith.constant 0 : index
      %12 = vector.load %arg8[%c0_6, %c0_7] : memref<32x1xf32, #tpu.memory_space<vmem>>, vector<32x1xf32>
      %13 = math.log %12 : vector<32x1xf32>
      %14 = arith.addf %11, %13 : vector<32x1xf32>
      %c512_i32 = arith.constant 512 : i32
      %15 = arith.muli %arg2, %c512_i32 : i32
      %16 = tpu.assume_multiple %15, 512 : i32
      %c0_8 = arith.constant 0 : index
      %17 = arith.index_cast %16 : i32 to index
      %18 = vector.load %arg9[%c0_8, %17] : memref<32x512xf32, #tpu.memory_space<vmem>>, vector<32x512xf32>
      %19 = vector.broadcast %14 : vector<32x1xf32> to vector<32x512xf32>
      %20 = arith.subf %18, %19 : vector<32x512xf32>
      %c0_9 = arith.constant 0 : index
      %c0_10 = arith.constant 0 : index
      %21 = vector.load %arg6[%c0_9, %c0_10] : memref<32x512xf32, #tpu.memory_space<vmem>>, vector<32x512xf32>
      tpu.vector_store %arg6[%c0_9, %c0_10], %20 {strides = array<i32>} : memref<32x512xf32, #tpu.memory_space<vmem>>, vector<32x512xf32>,
    } else {
    }
    return
  }
  func.func @transform_0(%arg0: i32, %arg1: i32, %arg2: i32) -> (i32, i32) {
    %c0_i32 = arith.constant 0 : i32
    %c0_i32_0 = arith.constant 0 : i32
    return %arg0, %c0_i32 : i32, i32
  }
  func.func @transform_1(%arg0: i32, %arg1: i32, %arg2: i32) -> (i32, i32) {
    %c1_i32 = arith.constant 1 : i32
    %0 = arith.subi %c1_i32, %arg1 : i32
    %1 = arith.muli %arg2, %0 : i32
    %c0_i32 = arith.constant 0 : i32
    %2 = arith.muli %c0_i32, %arg1 : i32
    %3 = arith.addi %1, %2 : i32
    %c0_i32_0 = arith.constant 0 : i32
    %c0_i32_1 = arith.constant 0 : i32
    return %c0_i32_0, %3 : i32, i32
  }
  func.func @transform_2(%arg0: i32, %arg1: i32, %arg2: i32) -> (i32, i32) {
    %c1_i32 = arith.constant 1 : i32
    %0 = arith.subi %c1_i32, %arg1 : i32
    %1 = arith.muli %arg2, %0 : i32
    %c0_i32 = arith.constant 0 : i32
    %2 = arith.muli %c0_i32, %arg1 : i32
    %3 = arith.addi %1, %2 : i32
    %c0_i32_0 = arith.constant 0 : i32
    %c0_i32_1 = arith.constant 0 : i32
    return %c0_i32_0, %3 : i32, i32
  }
  func.func @transform_3(%arg0: i32, %arg1: i32, %arg2: i32) -> (i32, i32) {
    %0 = arith.muli %arg1, %arg2 : i32
    %c0_i32 = arith.constant 0 : i32
    return %arg0, %0 : i32, i32
  }
}

</mosaic_0001>

<llo_original>
// kernel: _forward.1
$region0: #{_forward.1}
  #allocation0 [shape = 'u32[]', space=smem, size = 0x4, offset = 0x4, fixed_abs, tag = 'smem constant byte address 0x4 - core index']
  #allocation1 [shape = 'u32[144,128]{1,0:T(1,128)}', space=vmem, size = 0x12000, scoped, tag = 'internal scratch']
  #allocation2 [shape = 'f32[32,1]{1,0:T(8,128)}', space=vmem, size = 0x4000, scoped, tag = 'scratch operand']
  #allocation3 [shape = 'f32[32,1]{1,0:T(8,128)}', space=vmem, size = 0x4000, scoped, tag = 'scratch operand']
  #allocation4 [shape = 'f32[32,512]{1,0:T(8,128)}', space=vmem, size = 0x10000, scoped, tag = 'scratch operand']
  %s0 = inlined_call_operand.vmem [shape: bf16[32,64], index: 0, kind: input, shape index: {}]
  %s1 = inlined_call_operand.vmem [shape: bf16[64,512], index: 1, kind: input, shape index: {}]
  %s2 = inlined_call_operand.vmem [shape: f32[1,512], index: 2, kind: input, shape index: {}]
  %s3 = inlined_call_operand.hbm [shape: f32[32,512], index: 3, kind: output, shape index: {}]
  %s4 = sld [smem:[#allocation0]]
  $region57: #{_forward.1} parent=0
    _
  %s6 = ssub.s32 1, %s4
  %s7 = scalar_select 0, %s6, %s4
  $region1: #{_forward.1} parent=0
    #allocation5 [shape = 'u8[131072]{0}', space=vmem, size = 0x20000, scoped, tag = 'output window, operand 0']
    #allocation6 [shape = 's32[2]{0}', space=sflag, size = 0x8, scoped, tag = 'scoped memory for _forward.1']
    %8 = vsyncpa [#allocation6], 0
    %s9 = scalar_lea.sflag [#allocation6], 1
    %10 = vsyncpa %s9, 0
    loop: start=0, step=1, limit=4
    $region2: #{_forward.1} parent=1 // loop_pre_header
      _
    $region3: #{_forward.1} parent=1 // loop_header
      %s12 = sphi 0, %s16
      %p13 = scmp.ge.s32.totalorder %s12, 4
      %s19 = sphi 0, %s38
      %s20 = sphi 0, %s34
      %s21 = sphi 0, %s30
      %s22 = sphi 0, %s19
      %s23 = sphi 0, %s20
      %s24 = sphi 0, %s21
      %s25 = sphi 0, %s22
      %s26 = sphi 0, %s23
      %s27 = sphi 0, %s24
      %s41 = sphi 0, %s43
      %s44 = sphi 0, %s41
      %s45 = sphi 0, %s44
      %s61 = sphi 0, %s45
      %s71 = sphi 0, %s73
      %s74 = sphi 0, %s71
      %s75 = sphi 0, %s74
      %s91 = sphi 0, %s75
      %s101 = sphi 0, %s103
      %s104 = sphi 0, %s101
      %s105 = sphi 0, %s104
      %s121 = sphi 0, %s105
      %s131 = sphi 0, %s133
      %s134 = sphi 0, %s131
      %s135 = sphi 0, %s134
      %s151 = sphi 0, %s135
    $region4: #{_forward.1} parent=1 // loop_header_branch
      %15 = sbr.rel (%p13) target = $region8
    $region5: #{_forward.1} parent=1 // loop_body
      %s17 = ssub.s32 %s12, 1
      %s18 = ssub.s32 %s12, 2
      %s28 = sadd.s32 1, %s21
      %p29 = scmp.ge.s32.totalorder %s28, 1
      %s30 = scalar_select %p29, 0, %s28
      %s31 = sadd.s32 1, %s20
      %s32 = scalar_select %p29, %s31, %s20
      %p33 = scmp.ge.s32.totalorder %s32, 2
      %s34 = scalar_select %p33, 0, %s32
      %s35 = sadd.s32 1, %s19
      %s36 = scalar_select %p33, %s35, %s19
      %p37 = scmp.ge.s32.totalorder %s36, 1
      %s38 = scalar_select %p37, 0, %s36
      %s39 = ssub.s32 %s19, %s38
      %p40 = scmp.eq.s32.totalorder %s39, 0
      %s42 = sadd.s32 %s41, 1
      %s43 = scalar_select %p40, %s41, %s42
      %p46 = pneg %p40
      %p47 = scmp.eq.s32.totalorder %s12, 1
      %p48 = por %p46, %p47
      %p49 = scmp.ne.s32.totalorder %s41, %s44
      %p50 = scmp.eq.s32.totalorder %s12, 0
      %p51 = por %p49, %p50
      %p52 = scmp.ne.s32.totalorder %s41, %s44
      %p53 = scmp.eq.s32.totalorder %s17, 1
      %p54 = por %p52, %p53
      %p55 = scmp.ne.s32.totalorder %s44, %s45
      %p56 = scmp.eq.s32.totalorder %s17, 0
      %p57 = por %p55, %p56
      %p58 = scmp.ne.s32.totalorder %s44, %s45
      %p59 = scmp.eq.s32.totalorder %s18, 1
      %p60 = por %p58, %p59
      %p62 = scmp.ne.s32.totalorder %s45, %s61
      %p63 = scmp.eq.s32.totalorder %s18, 0
      %p64 = por %p62, %p63
      %s65 = ssub.s32 1, %s20
      %s66 = smul.u32 %s21, %s65
      %s67 = ssub.s32 1, %s34
      %s68 = smul.u32 %s30, %s67
      %s69 = ssub.s32 %s66, %s68
      %p70 = scmp.eq.s32.totalorder %s69, 0
      %s72 = sadd.s32 %s71, 1
      %s73 = scalar_select %p70, %s71, %s72
      %p76 = pneg %p70
      %p77 = scmp.eq.s32.totalorder %s12, 1
      %p78 = por %p76, %p77
      %p79 = scmp.ne.s32.totalorder %s71, %s74
      %p80 = scmp.eq.s32.totalorder %s12, 0
      %p81 = por %p79, %p80
      %p82 = scmp.ne.s32.totalorder %s71, %s74
      %p83 = scmp.eq.s32.totalorder %s17, 1
      %p84 = por %p82, %p83
      %p85 = scmp.ne.s32.totalorder %s74, %s75
      %p86 = scmp.eq.s32.totalorder %s17, 0
      %p87 = por %p85, %p86
      %p88 = scmp.ne.s32.totalorder %s74, %s75
      %p89 = scmp.eq.s32.totalorder %s18, 1
      %p90 = por %p88, %p89
      %p92 = scmp.ne.s32.totalorder %s75, %s91
      %p93 = scmp.eq.s32.totalorder %s18, 0
      %p94 = por %p92, %p93
      %s95 = ssub.s32 1, %s20
      %s96 = smul.u32 %s21, %s95
      %s97 = ssub.s32 1, %s34
      %s98 = smul.u32 %s30, %s97
      %s99 = ssub.s32 %s96, %s98
      %p100 = scmp.eq.s32.totalorder %s99, 0
      %s102 = sadd.s32 %s101, 1
      %s103 = scalar_select %p100, %s101, %s102
      %p106 = pneg %p100
      %p107 = scmp.eq.s32.totalorder %s12, 1
      %p108 = por %p106, %p107
      %p109 = scmp.ne.s32.totalorder %s101, %s104
      %p110 = scmp.eq.s32.totalorder %s12, 0
      %p111 = por %p109, %p110
      %p112 = scmp.ne.s32.totalorder %s101, %s104
      %p113 = scmp.eq.s32.totalorder %s17, 1
      %p114 = por %p112, %p113
      %p115 = scmp.ne.s32.totalorder %s104, %s105
      %p116 = scmp.eq.s32.totalorder %s17, 0
      %p117 = por %p115, %p116
      %p118 = scmp.ne.s32.totalorder %s104, %s105
      %p119 = scmp.eq.s32.totalorder %s18, 1
      %p120 = por %p118, %p119
      %p122 = scmp.ne.s32.totalorder %s105, %s121
      %p123 = scmp.eq.s32.totalorder %s18, 0
      %p124 = por %p122, %p123
      %s125 = smul.u32 %s20, %s21
      %s126 = smul.u32 %s34, %s30
      %s127 = ssub.s32 %s19, %s38
      %s128 = ssub.s32 %s125, %s126
      %s129 = sor.u32 %s127, %s128
      %p130 = scmp.eq.s32.totalorder %s129, 0
      %s132 = sadd.s32 %s131, 1
      %s133 = scalar_select %p130, %s131, %s132
      %p136 = pneg %p130
      %p137 = scmp.eq.s32.totalorder %s12, 1
      %p138 = por %p136, %p137
      %p139 = scmp.ne.s32.totalorder %s131, %s134
      %p140 = scmp.eq.s32.totalorder %s12, 0
      %p141 = por %p139, %p140
      %p142 = scmp.ne.s32.totalorder %s131, %s134
      %p143 = scmp.eq.s32.totalorder %s17, 1
      %p144 = por %p142, %p143
      %p145 = scmp.ne.s32.totalorder %s134, %s135
      %p146 = scmp.eq.s32.totalorder %s17, 0
      %p147 = por %p145, %p146
      %p148 = scmp.ne.s32.totalorder %s134, %s135
      %p149 = scmp.eq.s32.totalorder %s18, 1
      %p150 = por %p148, %p149
      %p152 = scmp.ne.s32.totalorder %s135, %s151
      %p153 = scmp.eq.s32.totalorder %s18, 0
      %p154 = por %p152, %p153
      %p155 = scmp.le.s32.totalorder 1, %s12
      %p156 = scmp.lt.s32.totalorder %s12, 3
      %p157 = pnand %p155, %p156
      %p158 = pneg %p157
      // Predicated region
      $region9: #{_forward.1} parent=5 // pred_check
        _
      $region10: #{_forward.1} parent=5 // pred_check_branch
        %160 = sbr.rel (%p157) target = $region12
      $region11: #{_forward.1} parent=5 // pred_region
        %s161 = ssub.s32 %s12, 1
        // Predicated region
        $region13: #{_forward.1} parent=11 // pred_check
          %p162 = pneg %p57
        $region14: #{_forward.1} parent=11 // pred_check_branch
          %164 = sbr.rel (%p162) target = $region16
        $region15: #{_forward.1} parent=11 // pred_region
          %s165 = smul.u32 4, %s22
          %p166 = scmp.lt.s32.totalorder %s165, 3
          %s167 = scalar_select %p166, %s165, 3
          %s168 = smul.addr %s167, 4
          %s169 = scalar_lea.vmem %s0, %s168
          %s170 = smul.u32 4, %s22
        $region16: #{_forward.1} parent=11 // pred_fallthru
          _
      $region12: #{_forward.1} parent=5 // pred_fallthru
        _
      %p171 = scmp.lt.s32.totalorder %s12, 2
      // Predicated region
      $region17: #{_forward.1} parent=5 // pred_check
        %p172 = pneg %p171
      $region18: #{_forward.1} parent=5 // pred_check_branch
        %174 = sbr.rel (%p172) target = $region20
      $region19: #{_forward.1} parent=5 // pred_region
        // Predicated region
        $region21: #{_forward.1} parent=19 // pred_check
          %p175 = pneg %p81
        $region22: #{_forward.1} parent=19 // pred_check_branch
          %177 = sbr.rel (%p175) target = $region24
        $region23: #{_forward.1} parent=19 // pred_region
          %s178 = ssub.s32 1, %s20
          %s179 = smul.u32 %s21, %s178
          %s180 = smul.u32 4, %s179
          %p181 = scmp.lt.s32.totalorder %s180, 3
          %s182 = scalar_select %p181, %s180, 3
          %s183 = smul.addr %s182, 4
          %s184 = scalar_lea.vmem %s1, %s183
          %s185 = ssub.s32 1, %s20
          %s186 = smul.u32 %s21, %s185
          %s187 = smul.u32 4, %s186
        $region24: #{_forward.1} parent=19 // pred_fallthru
          _
        // Predicated region
        $region25: #{_forward.1} parent=19 // pred_check
          %p188 = pneg %p111
        $region26: #{_forward.1} parent=19 // pred_check_branch
          %190 = sbr.rel (%p188) target = $region28
        $region27: #{_forward.1} parent=19 // pred_region
          %s191 = ssub.s32 1, %s20
          %s192 = smul.u32 %s21, %s191
          %s193 = smul.u32 4, %s192
          %p194 = scmp.lt.s32.totalorder %s193, 3
          %s195 = scalar_select %p194, %s193, 3
          %s196 = scalar_lea.vmem %s2, %s195
          %s197 = ssub.s32 1, %s20
          %s198 = smul.u32 %s21, %s197
          %s199 = smul.u32 4, %s198
        $region28: #{_forward.1} parent=19 // pred_fallthru
          _
      $region20: #{_forward.1} parent=5 // pred_fallthru
        _
      %p200 = scmp.le.s32.totalorder 1, %s12
      %p201 = scmp.lt.s32.totalorder %s12, 3
      %p202 = pnand %p200, %p201
      %p203 = pneg %p202
      // Predicated region
      $region29: #{_forward.1} parent=5 // pred_check
        _
      $region30: #{_forward.1} parent=5 // pred_check_branch
        %205 = sbr.rel (%p202) target = $region32
      $region31: #{_forward.1} parent=5 // pred_region
        %s206 = ssub.s32 %s12, 1
        %s207 = smul.u32 4, %s22
        %p208 = scmp.lt.s32.totalorder %s207, 3
        %s209 = scalar_select %p208, %s207, 3
        %s210 = smul.addr %s209, 4
        %s211 = scalar_lea.vmem %s0, %s210
        %p212 = pneg %p57
        %p213 = pneg %p54
        %s214 = ssub.s32 1, %s23
        %s215 = smul.u32 %s24, %s214
        %s216 = smul.u32 4, %s215
        %p217 = scmp.lt.s32.totalorder %s216, 3
        %s218 = scalar_select %p217, %s216, 3
        %s219 = smul.addr %s218, 4
        %s220 = scalar_lea.vmem %s1, %s219
        %p221 = pneg %p87
        %p222 = pneg %p84
        %s223 = ssub.s32 1, %s23
        %s224 = smul.u32 %s24, %s223
        %s225 = smul.u32 4, %s224
        %p226 = scmp.lt.s32.totalorder %s225, 3
        %s227 = scalar_select %p226, %s225, 3
        %s228 = scalar_lea.vmem %s2, %s227
        %p229 = pneg %p117
        %p230 = pneg %p114
        %p231 = pneg %p147
        %p232 = pneg %p144
        %s233 = sand.u32 %s134, 1
        %s234 = scalar_lea.sflag [#allocation6], %s233
        %s235 = sand.u32 %s134, 1
        %s236 = smul.addr %s235, 128
        %s237 = scalar_lea.vmem [#allocation5], %s236
        %s238 = smul.u32 4, %s22
        %p239 = scmp.lt.s32.totalorder %s238, 3
        %s240 = scalar_select %p239, %s238, 3
        %s241 = smul.addr %s240, 4
        %s242 = scalar_lea.vmem %s0, %s241
        %s243 = smul.u32 4, %s22
        %s244 = ssub.s32 1, %s23
        %s245 = smul.u32 %s24, %s244
        %s246 = smul.u32 4, %s245
        %p247 = scmp.lt.s32.totalorder %s246, 3
        %s248 = scalar_select %p247, %s246, 3
        %s249 = smul.addr %s248, 4
        %s250 = scalar_lea.vmem %s1, %s249
        %s251 = ssub.s32 1, %s23
        %s252 = smul.u32 %s24, %s251
        %s253 = smul.u32 4, %s252
        %s254 = ssub.s32 1, %s23
        %s255 = smul.u32 %s24, %s254
        %s256 = smul.u32 4, %s255
        %p257 = scmp.lt.s32.totalorder %s256, 3
        %s258 = scalar_select %p257, %s256, 3
        %s259 = scalar_lea.vmem %s2, %s258
        %s260 = ssub.s32 1, %s23
        %s261 = smul.u32 %s24, %s260
        %s262 = smul.u32 4, %s261
        %s263 = smul.u32 %s23, %s24
        %s264 = smul.u32 4, %s22
        %s265 = smul.u32 4, %s263
        %p267 = scmp.eq.s32.totalorder %s23, 0
        %p268 = scmp.eq.s32.totalorder %s24, 0
        %p269 = pnand %p267, %p268
        %p270 = pneg %p269
        // Predicated region
        $region33: #{_forward.1} parent=31 // pred_check
          _
        $region34: #{_forward.1} parent=31 // pred_check_branch
          %272 = sbr.rel (%p269) target = $region36
        $region35: #{_forward.1} parent=31 // pred_region
          %vm273 = vcmask 7168
          %274 = vst.msk [vmem:[#allocation2] sm:$0xff] %vm273, -inf
          %275 = vst.msk [vmem:[#allocation2 + $0x8] sm:$0xff] %vm273, -inf
          %276 = vst.msk [vmem:[#allocation2 + $0x10] sm:$0xff] %vm273, -inf
          %277 = vst.msk [vmem:[#allocation2 + $0x18] sm:$0xff] %vm273, -inf
          %278 = vst.msk [vmem:[#allocation3] sm:$0xff] %vm273, 0.0
          %279 = vst.msk [vmem:[#allocation3 + $0x8] sm:$0xff] %vm273, 0.0
          %280 = vst.msk [vmem:[#allocation3 + $0x10] sm:$0xff] %vm273, 0.0
          %281 = vst.msk [vmem:[#allocation3 + $0x18] sm:$0xff] %vm273, 0.0
        $region36: #{_forward.1} parent=31 // pred_fallthru
          _
        // Predicated region
        $region37: #{_forward.1} parent=31 // pred_check
          %p282 = pneg %p267
        $region38: #{_forward.1} parent=31 // pred_check_branch
          %284 = sbr.rel (%p282) target = $region40
        $region39: #{_forward.1} parent=31 // pred_region
          %v285 = vld [vmem:[%s242] sm:$0xf]
          %v286 = vld [vmem:[%s242 + $0x4] sm:$0xf]
          %v287 = vld [vmem:[%s242 + $0x8] sm:$0xf]
          %v288 = vld [vmem:[%s242 + $0xc] sm:$0xf]
          %v289 = vld [vmem:[%s250] sm:$0xff]
          %v290 = vld [vmem:[%s250 + $0x8] sm:$0xff]
          %v291 = vld [vmem:[%s250 + $0x10] sm:$0xff]
          %v292 = vld [vmem:[%s250 + $0x18] sm:$0xff]
          %v293 = vld [vmem:[%s250 + $0x20] sm:$0xff]
          %v294 = vld [vmem:[%s250 + $0x28] sm:$0xff]
          %v295 = vld [vmem:[%s250 + $0x30] sm:$0xff]
          %v296 = vld [vmem:[%s250 + $0x38] sm:$0xff]
          %v297 = vld [vmem:[%s250 + $0x40] sm:$0xff]
          %v298 = vld [vmem:[%s250 + $0x48] sm:$0xff]
          %v299 = vld [vmem:[%s250 + $0x50] sm:$0xff]
          %v300 = vld [vmem:[%s250 + $0x58] sm:$0xff]
          %v301 = vld [vmem:[%s250 + $0x60] sm:$0xff]
          %v302 = vld [vmem:[%s250 + $0x68] sm:$0xff]
          %v303 = vld [vmem:[%s250 + $0x70] sm:$0xff]
          %v304 = vld [vmem:[%s250 + $0x78] sm:$0xff]
          %v305 = vld [vmem:[%s259] sm:$0xf]
          %v307 = vlaneseq
          %v308 = vshrl.u32 %v307, 7
          %v309 = vsub.s32 0, %v308
          %v310 = vrot.slane %v305, %v309
          %v311 = vlaneseq
          %v312 = vshrl.u32 %v311, 7
          %v313 = vsub.s32 1, %v312
          %v314 = vrot.slane %v305, %v313
          %v315 = vlaneseq
          %v316 = vshrl.u32 %v315, 7
          %v317 = vsub.s32 2, %v316
          %v318 = vrot.slane %v305, %v317
          %v319 = vlaneseq
          %v320 = vshrl.u32 %v319, 7
          %v321 = vsub.s32 3, %v320
          %v322 = vrot.slane %v305, %v321
          %v331 = vunpack.c.l.b16 %v285
          %v332 = vunpack.c.l.b16 %v286
          %v333 = vunpack.c.l.b16 %v287
          %v334 = vunpack.c.l.b16 %v288
          %v335 = vpack.c.b16 %v332, %v331
          %v336 = vpack.c.b16 %v334, %v333
          %v353 = vunpack.c.l.b16 %v289
          %v354 = vunpack.c.h.b16 %v289
          %v355 = vunpack.c.l.b16 %v290
          %v356 = vunpack.c.h.b16 %v290
          %v357 = vunpack.c.l.b16 %v291
          %v358 = vunpack.c.h.b16 %v291
          %v359 = vunpack.c.l.b16 %v292
          %v360 = vunpack.c.h.b16 %v292
          %v361 = vunpack.c.l.b16 %v293
          %v362 = vunpack.c.h.b16 %v293
          %v363 = vunpack.c.l.b16 %v294
          %v364 = vunpack.c.h.b16 %v294
          %v365 = vunpack.c.l.b16 %v295
          %v366 = vunpack.c.h.b16 %v295
          %v367 = vunpack.c.l.b16 %v296
          %v368 = vunpack.c.h.b16 %v296
          %v369 = vunpack.c.l.b16 %v297
          %v370 = vunpack.c.h.b16 %v297
          %v371 = vunpack.c.l.b16 %v298
          %v372 = vunpack.c.h.b16 %v298
          %v373 = vunpack.c.l.b16 %v299
          %v374 = vunpack.c.h.b16 %v299
          %v375 = vunpack.c.l.b16 %v300
          %v376 = vunpack.c.h.b16 %v300
          %v377 = vunpack.c.l.b16 %v301
          %v378 = vunpack.c.h.b16 %v301
          %v379 = vunpack.c.l.b16 %v302
          %v380 = vunpack.c.h.b16 %v302
          %v381 = vunpack.c.l.b16 %v303
          %v382 = vunpack.c.h.b16 %v303
          %v383 = vunpack.c.l.b16 %v304
          %v384 = vunpack.c.h.b16 %v304
          %v385 = vpack.c.b16 %v357, %v353
          %v386 = vpack.c.b16 %v358, %v354
          %v387 = vpack.c.b16 %v359, %v355
          %v388 = vpack.c.b16 %v360, %v356
          %v389 = vpack.c.b16 %v365, %v361
          %v390 = vpack.c.b16 %v366, %v362
          %v391 = vpack.c.b16 %v367, %v363
          %v392 = vpack.c.b16 %v368, %v364
          %v393 = vpack.c.b16 %v373, %v369
          %v394 = vpack.c.b16 %v374, %v370
          %v395 = vpack.c.b16 %v375, %v371
          %v396 = vpack.c.b16 %v376, %v372
          %v397 = vpack.c.b16 %v381, %v377
          %v398 = vpack.c.b16 %v382, %v378
          %v399 = vpack.c.b16 %v383, %v379
          %v400 = vpack.c.b16 %v384, %v380
          %vm417 = vcmask 523264
          %v419 = vsel %vm417, %v335, 0
          %v422 = vsel %vm417, %v336, 0
          %424 = vmatprep.subr.bf16.mxu0 0
          %425 = vmatpush1.bf16.msra.mxu0 0
          %426 = vmatprep.subr.bf16.mxu0 0
          %427 = vmatpush1.bf16.msra.mxu0 0
          %428 = vmatprep.subr.bf16.mxu0 0
          %429 = vmatpush1.bf16.msra.mxu0 0
          %430 = vmatprep.subr.bf16.mxu0 0
          %431 = vmatpush1.bf16.msra.mxu0 0
          %432 = vmatprep.subr.bf16.mxu0 %v398
          %433 = vmatpush1.bf16.msra.mxu0 %v397
          %434 = vmatprep.subr.bf16.mxu0 %v394
          %435 = vmatpush1.bf16.msra.mxu0 %v393
          %436 = vmatprep.subr.bf16.mxu0 %v390
          %437 = vmatpush1.bf16.msra.mxu0 %v389
          %438 = vmatprep.subr.bf16.mxu0 %v386
          %439 = vmatpush1.bf16.msra.mxu0 %v385
          %440 = vmatprep.subr.bf16.mxu0 0
          %441 = vmatpush2.bf16.msra.mxu0 0
          %442 = vmatprep.subr.bf16.mxu0 0
          %443 = vmatpush2.bf16.msra.mxu0 0
          %444 = vmatprep.subr.bf16.mxu0 0
          %445 = vmatpush2.bf16.msra.mxu0 0
          %446 = vmatprep.subr.bf16.mxu0 0
          %447 = vmatpush2.bf16.msra.mxu0 0
          %448 = vmatprep.subr.bf16.mxu0 0
          %449 = vmatpush2.bf16.msra.mxu0 0
          %450 = vmatprep.subr.bf16.mxu0 0
          %451 = vmatpush2.bf16.msra.mxu0 0
          %452 = vmatprep.subr.bf16.mxu0 0
          %453 = vmatpush2.bf16.msra.mxu0 0
          %454 = vmatprep.subr.bf16.mxu0 0
          %455 = vmatpush2.bf16.msra.mxu0 0
          %456 = vmatprep.mubr.bf16.mxu0 0
          %457 = vmatmul.mubr.bf16.gmra.mxu0 %v419
          %v458 = vpop.f32.mrf.mxu0
          %v459 = vadd.f32 %v310, %v458
          %v460 = vpop.f32.mrf.mxu0
          %v461 = vadd.f32 %v314, %v460
          %v462 = vpop.f32.mrf.mxu0
          %v463 = vadd.f32 %v310, %v462
          %v464 = vpop.f32.mrf.mxu0
          %v465 = vadd.f32 %v314, %v464
          %466 = vmatprep.mubr.bf16.mxu0 0
          %467 = vmatmul.mubr.bf16.gmra.mxu0 %v422
          %v468 = vpop.f32.mrf.mxu0
          %v469 = vadd.f32 %v310, %v468
          %v470 = vpop.f32.mrf.mxu0
          %v471 = vadd.f32 %v314, %v470
          %v472 = vpop.f32.mrf.mxu0
          %v473 = vadd.f32 %v310, %v472
          %v474 = vpop.f32.mrf.mxu0
          %v475 = vadd.f32 %v314, %v474
          %476 = vdwg.mxu0
          %477 = vmatprep.subr.bf16.mxu0 0
          %478 = vmatpush1.bf16.msra.mxu0 0
          %479 = vmatprep.subr.bf16.mxu0 0
          %480 = vmatpush1.bf16.msra.mxu0 0
          %481 = vmatprep.subr.bf16.mxu0 0
          %482 = vmatpush1.bf16.msra.mxu0 0
          %483 = vmatprep.subr.bf16.mxu0 0
          %484 = vmatpush1.bf16.msra.mxu0 0
          %485 = vmatprep.subr.bf16.mxu0 %v400
          %486 = vmatpush1.bf16.msra.mxu0 %v399
          %487 = vmatprep.subr.bf16.mxu0 %v396
          %488 = vmatpush1.bf16.msra.mxu0 %v395
          %489 = vmatprep.subr.bf16.mxu0 %v392
          %490 = vmatpush1.bf16.msra.mxu0 %v391
          %491 = vmatprep.subr.bf16.mxu0 %v388
          %492 = vmatpush1.bf16.msra.mxu0 %v387
          %493 = vmatprep.subr.bf16.mxu0 0
          %494 = vmatpush2.bf16.msra.mxu0 0
          %495 = vmatprep.subr.bf16.mxu0 0
          %496 = vmatpush2.bf16.msra.mxu0 0
          %497 = vmatprep.subr.bf16.mxu0 0
          %498 = vmatpush2.bf16.msra.mxu0 0
          %499 = vmatprep.subr.bf16.mxu0 0
          %500 = vmatpush2.bf16.msra.mxu0 0
          %501 = vmatprep.subr.bf16.mxu0 0
          %502 = vmatpush2.bf16.msra.mxu0 0
          %503 = vmatprep.subr.bf16.mxu0 0
          %504 = vmatpush2.bf16.msra.mxu0 0
          %505 = vmatprep.subr.bf16.mxu0 0
          %506 = vmatpush2.bf16.msra.mxu0 0
          %507 = vmatprep.subr.bf16.mxu0 0
          %508 = vmatpush2.bf16.msra.mxu0 0
          %509 = vmatprep.mubr.bf16.mxu0 0
          %510 = vmatmul.mubr.bf16.gmra.mxu0 %v419
          %v511 = vpop.f32.mrf.mxu0
          %v512 = vadd.f32 %v318, %v511
          %v513 = vpop.f32.mrf.mxu0
          %v514 = vadd.f32 %v322, %v513
          %v515 = vpop.f32.mrf.mxu0
          %v516 = vadd.f32 %v318, %v515
          %v517 = vpop.f32.mrf.mxu0
          %v518 = vadd.f32 %v322, %v517
          %519 = vmatprep.mubr.bf16.mxu0 0
          %520 = vmatmul.mubr.bf16.gmra.mxu0 %v422
          %v521 = vpop.f32.mrf.mxu0
          %v522 = vadd.f32 %v318, %v521
          %v523 = vpop.f32.mrf.mxu0
          %v524 = vadd.f32 %v322, %v523
          %v525 = vpop.f32.mrf.mxu0
          %v526 = vadd.f32 %v318, %v525
          %v527 = vpop.f32.mrf.mxu0
          %v528 = vadd.f32 %v322, %v527
          %529 = vdwg.mxu0
          %s530 = smul.u32 %s24, 512
          %s531 = sshra.s32 %s530, 7
          %s532 = sand.u32 %s530, 127
          %s533 = smul.addr %s531, 8
          %s534 = scalar_lea.vmem [#allocation4], %s533
          %535 = vst [vmem:[%s534] sm:$0xff] %v459
          %536 = vst [vmem:[%s534 + $0x8] sm:$0xff] %v461
          %537 = vst [vmem:[%s534 + $0x10] sm:$0xff] %v512
          %538 = vst [vmem:[%s534 + $0x18] sm:$0xff] %v514
          %539 = vst [vmem:[%s534 + $0x20] sm:$0xff] %v463
          %540 = vst [vmem:[%s534 + $0x28] sm:$0xff] %v465
          %541 = vst [vmem:[%s534 + $0x30] sm:$0xff] %v516
          %542 = vst [vmem:[%s534 + $0x38] sm:$0xff] %v518
          %543 = vst [vmem:[%s534 + $0x40] sm:$0xff] %v469
          %544 = vst [vmem:[%s534 + $0x48] sm:$0xff] %v471
          %545 = vst [vmem:[%s534 + $0x50] sm:$0xff] %v522
          %546 = vst [vmem:[%s534 + $0x58] sm:$0xff] %v524
          %547 = vst [vmem:[%s534 + $0x60] sm:$0xff] %v473
          %548 = vst [vmem:[%s534 + $0x68] sm:$0xff] %v475
          %549 = vst [vmem:[%s534 + $0x70] sm:$0xff] %v526
          %550 = vst [vmem:[%s534 + $0x78] sm:$0xff] %v528
          %v551 = vld [vmem:[#allocation2] sm:$0xff]
          %v552 = vld [vmem:[#allocation2 + $0x8] sm:$0xff]
          %v553 = vld [vmem:[#allocation2 + $0x10] sm:$0xff]
          %v554 = vld [vmem:[#allocation2 + $0x18] sm:$0xff]
          %v555 = vmax.f32 %v459, %v461
          %v556 = vmax.f32 %v555, %v512
          %v557 = vmax.f32 %v556, %v514
          %558 = vmax.xlane.f32.xlu0 %v557
          %v559 = vpop.xlane.xlu0 %558
          %v560 = vmax.f32 %v463, %v465
          %v561 = vmax.f32 %v560, %v516
          %v562 = vmax.f32 %v561, %v518
          %563 = vmax.xlane.f32.xlu0 %v562
          %v564 = vpop.xlane.xlu0 %563
          %v565 = vmax.f32 %v469, %v471
          %v566 = vmax.f32 %v565, %v522
          %v567 = vmax.f32 %v566, %v524
          %568 = vmax.xlane.f32.xlu0 %v567
          %v569 = vpop.xlane.xlu0 %568
          %v570 = vmax.f32 %v473, %v475
          %v571 = vmax.f32 %v570, %v526
          %v572 = vmax.f32 %v571, %v528
          %573 = vmax.xlane.f32.xlu0 %v572
          %v574 = vpop.xlane.xlu0 %573
          %v575 = vmax.f32 %v551, %v559
          %v576 = vmax.f32 %v552, %v564
          %v577 = vmax.f32 %v553, %v569
          %v578 = vmax.f32 %v554, %v574
          %v579 = vld [vmem:[#allocation3] sm:$0xff]
          %v580 = vld [vmem:[#allocation3 + $0x8] sm:$0xff]
          %v581 = vld [vmem:[#allocation3 + $0x10] sm:$0xff]
          %v582 = vld [vmem:[#allocation3 + $0x18] sm:$0xff]
          %v583 = vsub.f32 %v551, %v575
          %v584 = vsub.f32 %v552, %v576
          %v585 = vsub.f32 %v553, %v577
          %v586 = vsub.f32 %v554, %v578
          %v587 = vmul.f32 %v583, 1.442695
          %v588 = vpow.pop %v587
          %v589 = vmul.f32 %v584, 1.442695
          %v590 = vpow.pop %v589
          %v591 = vmul.f32 %v585, 1.442695
          %v592 = vpow.pop %v591
          %v593 = vmul.f32 %v586, 1.442695
          %v594 = vpow.pop %v593
          %v595 = vmul.f32 %v579, %v588
          %v596 = vmul.f32 %v580, %v590
          %v597 = vmul.f32 %v581, %v592
          %v598 = vmul.f32 %v582, %v594
          %600 = vset.pattern.permute.xlu0 0
          %601 = vperm.xlu0 %600, %v575
          %v602 = vpop.permute.xlu0 %601
          %605 = vset.pattern.permute.xlu0 0
          %606 = vperm.xlu0 %605, %v576
          %v607 = vpop.permute.xlu0 %606
          %610 = vset.pattern.permute.xlu0 0
          %611 = vperm.xlu0 %610, %v577
          %v612 = vpop.permute.xlu0 %611
          %615 = vset.pattern.permute.xlu0 0
          %616 = vperm.xlu0 %615, %v578
          %v617 = vpop.permute.xlu0 %616
          %v619 = vsub.f32 %v459, %v602
          %v620 = vsub.f32 %v461, %v602
          %v621 = vsub.f32 %v512, %v602
          %v622 = vsub.f32 %v514, %v602
          %v623 = vsub.f32 %v463, %v607
          %v624 = vsub.f32 %v465, %v607
          %v625 = vsub.f32 %v516, %v607
          %v626 = vsub.f32 %v518, %v607
          %v627 = vsub.f32 %v469, %v612
          %v628 = vsub.f32 %v471, %v612
          %v629 = vsub.f32 %v522, %v612
          %v630 = vsub.f32 %v524, %v612
          %v631 = vsub.f32 %v473, %v617
          %v632 = vsub.f32 %v475, %v617
          %v633 = vsub.f32 %v526, %v617
          %v634 = vsub.f32 %v528, %v617
          %v635 = vmul.f32 %v619, 1.442695
          %v636 = vpow.pop %v635
          %v637 = vmul.f32 %v620, 1.442695
          %v638 = vpow.pop %v637
          %v639 = vmul.f32 %v621, 1.442695
          %v640 = vpow.pop %v639
          %v641 = vmul.f32 %v622, 1.442695
          %v642 = vpow.pop %v641
          %v643 = vmul.f32 %v623, 1.442695
          %v644 = vpow.pop %v643
          %v645 = vmul.f32 %v624, 1.442695
          %v646 = vpow.pop %v645
          %v647 = vmul.f32 %v625, 1.442695
          %v648 = vpow.pop %v647
          %v649 = vmul.f32 %v626, 1.442695
          %v650 = vpow.pop %v649
          %v651 = vmul.f32 %v627, 1.442695
          %v652 = vpow.pop %v651
          %v653 = vmul.f32 %v628, 1.442695
          %v654 = vpow.pop %v653
          %v655 = vmul.f32 %v629, 1.442695
          %v656 = vpow.pop %v655
          %v657 = vmul.f32 %v630, 1.442695
          %v658 = vpow.pop %v657
          %v659 = vmul.f32 %v631, 1.442695
          %v660 = vpow.pop %v659
          %v661 = vmul.f32 %v632, 1.442695
          %v662 = vpow.pop %v661
          %v663 = vmul.f32 %v633, 1.442695
          %v664 = vpow.pop %v663
          %v665 = vmul.f32 %v634, 1.442695
          %v666 = vpow.pop %v665
          %v667 = vadd.f32 %v636, %v638
          %v668 = vadd.f32 %v667, %v640
          %v669 = vadd.f32 %v668, %v642
          %670 = vadd.xlane.f32.xlu0 %v669
          %v671 = vpop.xlane.xlu0 %670
          %v672 = vadd.f32 %v644, %v646
          %v673 = vadd.f32 %v672, %v648
          %v674 = vadd.f32 %v673, %v650
          %675 = vadd.xlane.f32.xlu0 %v674
          %v676 = vpop.xlane.xlu0 %675
          %v677 = vadd.f32 %v652, %v654
          %v678 = vadd.f32 %v677, %v656
          %v679 = vadd.f32 %v678, %v658
          %680 = vadd.xlane.f32.xlu0 %v679
          %v681 = vpop.xlane.xlu0 %680
          %v682 = vadd.f32 %v660, %v662
          %v683 = vadd.f32 %v682, %v664
          %v684 = vadd.f32 %v683, %v666
          %685 = vadd.xlane.f32.xlu0 %v684
          %v686 = vpop.xlane.xlu0 %685
          %v687 = vadd.f32 %v595, %v671
          %v688 = vadd.f32 %v596, %v676
          %v689 = vadd.f32 %v597, %v681
          %v690 = vadd.f32 %v598, %v686
          %vm691 = vcmask 7168
          %692 = vst.msk [vmem:[#allocation3] sm:$0xff] %vm691, %v687
          %693 = vst.msk [vmem:[#allocation3 + $0x8] sm:$0xff] %vm691, %v688
          %694 = vst.msk [vmem:[#allocation3 + $0x10] sm:$0xff] %vm691, %v689
          %695 = vst.msk [vmem:[#allocation3 + $0x18] sm:$0xff] %vm691, %v690
          %696 = vst.msk [vmem:[#allocation2] sm:$0xff] %vm691, %v575
          %697 = vst.msk [vmem:[#allocation2 + $0x8] sm:$0xff] %vm691, %v576
          %698 = vst.msk [vmem:[#allocation2 + $0x10] sm:$0xff] %vm691, %v577
          %699 = vst.msk [vmem:[#allocation2 + $0x18] sm:$0xff] %vm691, %v578
        $region40: #{_forward.1} parent=31 // pred_fallthru
          _
        %p700 = scmp.eq.s32.totalorder %s23, 1
        // Predicated region
        $region41: #{_forward.1} parent=31 // pred_check
          %p701 = pneg %p700
        $region42: #{_forward.1} parent=31 // pred_check_branch
          %703 = sbr.rel (%p701) target = $region44
        $region43: #{_forward.1} parent=31 // pred_region
          %v704 = vld [vmem:[#allocation2] sm:$0xff]
          %v705 = vld [vmem:[#allocation2 + $0x8] sm:$0xff]
          %v706 = vld [vmem:[#allocation2 + $0x10] sm:$0xff]
          %v707 = vld [vmem:[#allocation2 + $0x18] sm:$0xff]
          %v708 = vld [vmem:[#allocation3] sm:$0xff]
          %v709 = vld [vmem:[#allocation3 + $0x8] sm:$0xff]
          %v710 = vld [vmem:[#allocation3 + $0x10] sm:$0xff]
          %v711 = vld [vmem:[#allocation3 + $0x18] sm:$0xff]
          %v712 = vlog2.pop %v708
          %v713 = vmul.f32 %v712, 0.6931472
          %v714 = vlog2.pop %v709
          %v715 = vmul.f32 %v714, 0.6931472
          %v716 = vlog2.pop %v710
          %v717 = vmul.f32 %v716, 0.6931472
          %v718 = vlog2.pop %v711
          %v719 = vmul.f32 %v718, 0.6931472
          %v720 = vadd.f32 %v704, %v713
          %v721 = vadd.f32 %v705, %v715
          %v722 = vadd.f32 %v706, %v717
          %v723 = vadd.f32 %v707, %v719
          %s724 = smul.u32 %s24, 512
          %s725 = sshra.s32 %s724, 7
          %s726 = sand.u32 %s724, 127
          %s727 = smul.addr %s725, 8
          %s728 = scalar_lea.vmem [#allocation4], %s727
          %v729 = vld [vmem:[%s728] sm:$0xff]
          %v730 = vld [vmem:[%s728 + $0x8] sm:$0xff]
          %v731 = vld [vmem:[%s728 + $0x10] sm:$0xff]
          %v732 = vld [vmem:[%s728 + $0x18] sm:$0xff]
          %v733 = vld [vmem:[%s728 + $0x20] sm:$0xff]
          %v734 = vld [vmem:[%s728 + $0x28] sm:$0xff]
          %v735 = vld [vmem:[%s728 + $0x30] sm:$0xff]
          %v736 = vld [vmem:[%s728 + $0x38] sm:$0xff]
          %v737 = vld [vmem:[%s728 + $0x40] sm:$0xff]
          %v738 = vld [vmem:[%s728 + $0x48] sm:$0xff]
          %v739 = vld [vmem:[%s728 + $0x50] sm:$0xff]
          %v740 = vld [vmem:[%s728 + $0x58] sm:$0xff]
          %v741 = vld [vmem:[%s728 + $0x60] sm:$0xff]
          %v742 = vld [vmem:[%s728 + $0x68] sm:$0xff]
          %v743 = vld [vmem:[%s728 + $0x70] sm:$0xff]
          %v744 = vld [vmem:[%s728 + $0x78] sm:$0xff]
          %746 = vset.pattern.permute.xlu0 0
          %747 = vperm.xlu0 %746, %v720
          %v748 = vpop.permute.xlu0 %747
          %751 = vset.pattern.permute.xlu0 0
          %752 = vperm.xlu0 %751, %v721
          %v753 = vpop.permute.xlu0 %752
          %756 = vset.pattern.permute.xlu0 0
          %757 = vperm.xlu0 %756, %v722
          %v758 = vpop.permute.xlu0 %757
          %761 = vset.pattern.permute.xlu0 0
          %762 = vperm.xlu0 %761, %v723
          %v763 = vpop.permute.xlu0 %762
          %v765 = vsub.f32 %v729, %v748
          %v766 = vsub.f32 %v730, %v748
          %v767 = vsub.f32 %v731, %v748
          %v768 = vsub.f32 %v732, %v748
          %v769 = vsub.f32 %v733, %v753
          %v770 = vsub.f32 %v734, %v753
          %v771 = vsub.f32 %v735, %v753
          %v772 = vsub.f32 %v736, %v753
          %v773 = vsub.f32 %v737, %v758
          %v774 = vsub.f32 %v738, %v758
          %v775 = vsub.f32 %v739, %v758
          %v776 = vsub.f32 %v740, %v758
          %v777 = vsub.f32 %v741, %v763
          %v778 = vsub.f32 %v742, %v763
          %v779 = vsub.f32 %v743, %v763
          %v780 = vsub.f32 %v744, %v763
          %781 = vst [vmem:[%s237] sm:$0xff] %v765
          %782 = vst [vmem:[%s237 + $0x8] sm:$0xff] %v766
          %783 = vst [vmem:[%s237 + $0x10] sm:$0xff] %v767
          %784 = vst [vmem:[%s237 + $0x18] sm:$0xff] %v768
          %785 = vst [vmem:[%s237 + $0x20] sm:$0xff] %v769
          %786 = vst [vmem:[%s237 + $0x28] sm:$0xff] %v770
          %787 = vst [vmem:[%s237 + $0x30] sm:$0xff] %v771
          %788 = vst [vmem:[%s237 + $0x38] sm:$0xff] %v772
          %789 = vst [vmem:[%s237 + $0x40] sm:$0xff] %v773
          %790 = vst [vmem:[%s237 + $0x48] sm:$0xff] %v774
          %791 = vst [vmem:[%s237 + $0x50] sm:$0xff] %v775
          %792 = vst [vmem:[%s237 + $0x58] sm:$0xff] %v776
          %793 = vst [vmem:[%s237 + $0x60] sm:$0xff] %v777
          %794 = vst [vmem:[%s237 + $0x68] sm:$0xff] %v778
          %795 = vst [vmem:[%s237 + $0x70] sm:$0xff] %v779
          %796 = vst [vmem:[%s237 + $0x78] sm:$0xff] %v780
        $region44: #{_forward.1} parent=31 // pred_fallthru
          _
        %s797 = sand.u32 %s134, 1
        %s798 = scalar_lea.sflag [#allocation6], %s797
        %s799 = sand.u32 %s134, 1
        %s800 = smul.addr %s799, 128
        %s801 = scalar_lea.vmem [#allocation5], %s800
        // Predicated region
        $region45: #{_forward.1} parent=31 // pred_check
          %p802 = pneg %p144
        $region46: #{_forward.1} parent=31 // pred_check_branch
          %804 = sbr.rel (%p802) target = $region48
        $region47: #{_forward.1} parent=31 // pred_region
          %s805 = smul.u32 %s23, %s24
          %s806 = smul.u32 4, %s22
          %s807 = smul.u32 4, %s805
          %s809 = ssub.s32 2048, 2048
          %810 = vsyncadd %s798, %s809
          %s811 = smul.addr %s806, 4
          %s812 = sadd.s32 %s807, %s811
          %s813 = smul.addr %s812, 128
          %s814 = scalar_lea.hbm %s3, %s813
          %s815 = sshll.u32 %s801, 4
          %s816 = int_to_ptr.vmem [resolvable:$true] %s815
          %821 = dma.vmem_to_hbm [thread:$0]  %s816, 2048, %s814, %s798, 512, 512, 32
        $region48: #{_forward.1} parent=31 // pred_fallthru
          _
      $region32: #{_forward.1} parent=5 // pred_fallthru
        _
      %p822 = scmp.le.s32.totalorder 2, %s12
      // Predicated region
      $region49: #{_forward.1} parent=5 // pred_check
        %p823 = pneg %p822
      $region50: #{_forward.1} parent=5 // pred_check_branch
        %825 = sbr.rel (%p823) target = $region52
      $region51: #{_forward.1} parent=5 // pred_region
        %s826 = ssub.s32 %s12, 2
        // Predicated region
        $region53: #{_forward.1} parent=51 // pred_check
          %p827 = pneg %p150
        $region54: #{_forward.1} parent=51 // pred_check_branch
          %829 = sbr.rel (%p827) target = $region56
        $region55: #{_forward.1} parent=51 // pred_region
          %s830 = sand.u32 %s135, 1
          %s831 = scalar_lea.sflag [#allocation6], %s830
          %s832 = sand.u32 %s135, 1
          %s833 = smul.addr %s832, 128
          %s834 = scalar_lea.vmem [#allocation5], %s833
          %835 = dma.done %s831, 2048
        $region56: #{_forward.1} parent=51 // pred_fallthru
          _
      $region52: #{_forward.1} parent=5 // pred_fallthru
        _
    $region6: #{_forward.1} parent=1 // loop_footer
      %s16 = sadd.s32 1, %s12
    $region7: #{_forward.1} parent=1 // loop_footer_branch
      %11 = sbr.rel target = $region3
    $region8: #{_forward.1} parent=1 // loop_exit
      _
    %836 = vsyncpa [#allocation6], 1
    %s837 = scalar_lea.sflag [#allocation6], 1
    %838 = vsyncpa %s837, 1

</llo_original>
